<compile_context>
chip_gen: v7x
topology: tpu7x:2x2x1
jax: 0.10.0
libtpu: 0.0.40
codegen_flags: <defaults>
</compile_context>

<pallas_src>
import jax
import jax.numpy as jnp
from jax.experimental import pallas as pl
from jax.experimental.pallas import tpu as pltpu


def _sigmoid(x):
    # sigmoid(x) == 0.5 * tanh(x / 2) + 0.5  -- one EUP op + cheap VPU mul/add.
    return 0.5 * jnp.tanh(0.5 * x) + 0.5


# --------------------------------------------------------------------------
# Small-HW path: channels-last, C_out on the lane axis, bias folded into W.
# --------------------------------------------------------------------------
def _rows_kernel(x_ref, w_ref, o_ref):
    # x_ref: [TM, C_in+1]   (last column is all-ones -> bias folded into W)
    # w_ref: [C_in+1, C_out] VMEM-resident across the grid
    # o_ref: [TM, C_out]     lane-dense output (1152 = 9 * 128 unmasked lanes)
    acc = jnp.dot(x_ref[...], w_ref[...], preferred_element_type=jnp.float32)
    o_ref[...] = _sigmoid(acc).astype(o_ref.dtype)


# --------------------------------------------------------------------------
# Large-HW path: NCHW-native, HW on the lane axis, weight+bias packed as one
# [C_out, C_in+1] array (last column = bias).
# --------------------------------------------------------------------------
def _nchw_kernel(x_ref, wb_ref, o_ref):
    # x_ref:  [1, C_in, T]
    # wb_ref: [C_out, C_in+1]
    # o_ref:  [1, C_out, T]
    c_in = x_ref.shape[1]
    w = wb_ref[:, :c_in]                      # [C_out, C_in]
    b = wb_ref[:, c_in:]                      # [C_out, 1] -> lane-broadcast add
    acc = jnp.dot(w, x_ref[0], preferred_element_type=jnp.float32) + b
    o_ref[0] = _sigmoid(acc).astype(o_ref.dtype)


def conv1x1_sigmoid(x_nchw, weight, bias, *, small_hw_threshold=128,
                    tile_hw=1024, tile_m=512):
    """x_nchw: [N, C_in, H, W]; weight: [C_out, C_in, 1, 1]; bias: [C_out]."""
    N, C_in, H, W = x_nchw.shape
    C_out = weight.shape[0]
    HW = H * W

    w2 = weight.reshape(C_out, C_in)
    wb = jnp.concatenate([w2, bias.reshape(C_out, 1)], axis=1)  # [C_out, C_in+1]

    if HW < small_hw_threshold:
        # ---------------- channels-last path (the module's actual regime) ---
        M = N * HW
        if HW == 1:
            x_rows = x_nchw.reshape(M, C_in)           # bit-identical, free
        else:
            # Tiny arrays here -> this transpose is negligible HBM traffic.
            x_rows = (x_nchw.reshape(N, C_in, HW)
                      .transpose(0, 2, 1).reshape(M, C_in))
        ones = jnp.ones((M, 1), x_rows.dtype)
        x_aug = jnp.concatenate([x_rows, ones], axis=1)          # [M, C_in+1]
        w_aug_t = wb.T                                           # [C_in+1, C_out]

        TM = M if M <= tile_m else tile_m                        # full-extent or 512
        grid = (pl.cdiv(M, TM),)

        out2 = pl.pallas_call(
            _rows_kernel,
            out_shape=jax.ShapeDtypeStruct((M, C_out), x_nchw.dtype),
            grid_spec=pl.GridSpec(
                grid=grid,
                in_specs=[
                    pl.BlockSpec((TM, C_in + 1), lambda i: (i, 0)),
                    pl.BlockSpec((C_in + 1, C_out), lambda i: (0, 0)),
                ],
                out_specs=pl.BlockSpec((TM, C_out), lambda i: (i, 0)),
            ),
            compiler_params=pltpu.CompilerParams(
                dimension_semantics=("parallel",)),
        )(x_aug, w_aug_t)

        if HW == 1:
            return out2.reshape(N, C_out, H, W)
        return (out2.reshape(N, HW, C_out)
                .transpose(0, 2, 1).reshape(N, C_out, H, W))

    # -------------------- NCHW-native path for large spatial extents --------
    x3 = x_nchw.reshape(N, C_in, HW)          # free reshape, stays contiguous
    T = HW if HW <= tile_hw else tile_hw      # full-extent tile kills masked edge
    grid = (N, pl.cdiv(HW, T))

    out3 = pl.pallas_call(
        _nchw_kernel,
        out_shape=jax.ShapeDtypeStruct((N, C_out, HW), x_nchw.dtype),
        grid_spec=pl.GridSpec(
            grid=grid,
            in_specs=[
                pl.BlockSpec((1, C_in, T), lambda n, j: (n, 0, j)),
                pl.BlockSpec((C_out, C_in + 1), lambda n, j: (0, 0)),
            ],
            out_specs=pl.BlockSpec((1, C_out, T), lambda n, j: (n, 0, j)),
        ),
        compiler_params=pltpu.CompilerParams(
            dimension_semantics=("parallel", "parallel"),
            # T=1024 needs ~16 MB double-buffered; raise v5e's 16 MiB scoped
            # default.  32 MiB fits physical VMEM on v5e/v6e/v7x.
            vmem_limit_bytes=32 * 1024 * 1024),
    )(x3, wb)

    return out3.reshape(N, C_out, H, W)


def _reference(x, weight, bias):
    C_out, C_in = weight.shape[0], weight.shape[1]
    w2 = weight.reshape(C_out, C_in)
    y = jnp.einsum("nchw,oc->nohw", x, w2, precision=jax.lax.Precision.HIGHEST)
    return jax.nn.sigmoid(y + bias.reshape(1, C_out, 1, 1))


if __name__ == "__main__":
    key = jax.random.PRNGKey(0)
    kx, kw, kb, kx2, kx3, kx4 = jax.random.split(key, 6)

    C_in, C_out = 48, 1152
    bound = 1.0 / (C_in ** 0.5)       # PyTorch Conv2d default init bounds (1x1)
    weight = jax.random.uniform(kw, (C_out, C_in, 1, 1), jnp.float32, -bound, bound)
    bias = jax.random.uniform(kb, (C_out,), jnp.float32, -bound, bound)

    # 1) The module's actual shape: [1, 48, 1, 1] -> channels-last path, HW==1.
    x_small = jax.random.normal(kx, (1, C_in, 1, 1), dtype=jnp.float32)
    out_small = conv1x1_sigmoid(x_small, weight, bias)
    jax.block_until_ready(out_small)
    assert out_small.shape == (1, C_out, 1, 1)
    assert jnp.allclose(out_small, _reference(x_small, weight, bias),
                        atol=2e-4, rtol=2e-4)

    # 2) Small HW > 1 (HW=64 < 128): channels-last path with the tiny transpose.
    x_mid = jax.random.normal(kx2, (2, C_in, 8, 8), dtype=jnp.float32)
    out_mid = conv1x1_sigmoid(x_mid, weight, bias)
    jax.block_until_ready(out_mid)
    assert out_mid.shape == (2, C_out, 8, 8)
    assert jnp.allclose(out_mid, _reference(x_mid, weight, bias),
                        atol=2e-4, rtol=2e-4)

    # 3) HW=576 (>=128, <=1024): NCHW path, single full-extent (unmasked) tile.
    x_big = jax.random.normal(kx3, (2, C_in, 24, 24), dtype=jnp.float32)
    out_big = conv1x1_sigmoid(x_big, weight, bias)
    jax.block_until_ready(out_big)
    assert out_big.shape == (2, C_out, 24, 24)
    assert jnp.allclose(out_big, _reference(x_big, weight, bias),
                        atol=2e-4, rtol=2e-4)

    # 4) HW=1600 (>1024): NCHW path, tiled spatial axis (1024 + masked edge).
    x_huge = jax.random.normal(kx4, (1, C_in, 40, 40), dtype=jnp.float32)
    out_huge = conv1x1_sigmoid(x_huge, weight, bias)
    jax.block_until_ready(out_huge)
    assert out_huge.shape == (1, C_out, 40, 40)
    assert jnp.allclose(out_huge, _reference(x_huge, weight, bias),
                        atol=2e-4, rtol=2e-4)

    print("KERNEL_OK")
</pallas_src>

<mosaic_0001>
module attributes {stable_mosaic.version = 11 : i64} {
  func.func @_rows_kernel(%arg0: i32, %arg1: memref<1x49xf32, #tpu.memory_space<vmem>>, %arg2: memref<49x1152xf32, #tpu.memory_space<vmem>>, %arg3: memref<1x1152xf32, #tpu.memory_space<vmem>>) attributes {dimension_semantics = [#tpu.dimension_semantics<parallel>], iteration_bounds = array<i64: 1>, scalar_prefetch = 0 : i64, scratch_operands = 0 : i64, tpu.core_type = #tpu.core_type<tc>, window_params = [{transform_indices = @transform_0, window_bounds = array<i64: 1, 49>}, {pipeline_mode = #tpu.pipeline_mode<synchronous>, transform_indices = @transform_1, window_bounds = array<i64: 49, 1152>}, {transform_indices = @transform_2, window_bounds = array<i64: 1, 1152>}]} {
    %c0 = arith.constant 0 : index
    %c0_0 = arith.constant 0 : index
    %0 = vector.load %arg1[%c0, %c0_0] : memref<1x49xf32, #tpu.memory_space<vmem>>, vector<1x49xf32>
    %c0_1 = arith.constant 0 : index
    %c0_2 = arith.constant 0 : index
    %1 = vector.load %arg2[%c0_1, %c0_2] : memref<49x1152xf32, #tpu.memory_space<vmem>>, vector<49x1152xf32>
    %cst = arith.constant dense<0.000000e+00> : vector<1x1152xf32>
    %2 = tpu.matmul %0, %1, %cst {dimension_numbers = #tpu.dot_dimension_numbers<[1], [0], [0], [1], [0, 0, 1, 1], [], []>} : vector<1x49xf32>, vector<49x1152xf32>, vector<1x1152xf32> -> vector<1x1152xf32>
    %cst_3 = arith.constant 5.000000e-01 : f32
    %3 = vector.broadcast %cst_3 : f32 to vector<1x1152xf32>
    %4 = arith.mulf %3, %2 : vector<1x1152xf32>
    %5 = math.tanh %4 : vector<1x1152xf32>
    %cst_4 = arith.constant 5.000000e-01 : f32
    %6 = vector.broadcast %cst_4 : f32 to vector<1x1152xf32>
    %7 = arith.mulf %6, %5 : vector<1x1152xf32>
    %cst_5 = arith.constant 5.000000e-01 : f32
    %8 = vector.broadcast %cst_5 : f32 to vector<1x1152xf32>
    %9 = arith.addf %7, %8 : vector<1x1152xf32>
    %c0_6 = arith.constant 0 : index
    %c0_7 = arith.constant 0 : index
    %10 = vector.load %arg3[%c0_6, %c0_7] : memref<1x1152xf32, #tpu.memory_space<vmem>>, vector<1x1152xf32>
    tpu.vector_store %arg3[%c0_6, %c0_7], %9 {strides = array<i32>} : memref<1x1152xf32, #tpu.memory_space<vmem>>, vector<1x1152xf32>,
    return
  }
  func.func @transform_0(%arg0: i32) -> (i32, i32) {
    %c0_i32 = arith.constant 0 : i32
    %c0_i32_0 = arith.constant 0 : i32
    return %arg0, %c0_i32 : i32, i32
  }
  func.func @transform_1(%arg0: i32) -> (i32, i32) {
    %c0_i32 = arith.constant 0 : i32
    %c0_i32_0 = arith.constant 0 : i32
    %c0_i32_1 = arith.constant 0 : i32
    return %c0_i32, %c0_i32_0 : i32, i32
  }
  func.func @transform_2(%arg0: i32) -> (i32, i32) {
    %c0_i32 = arith.constant 0 : i32
    %c0_i32_0 = arith.constant 0 : i32
    return %arg0, %c0_i32 : i32, i32
  }
}

</mosaic_0001>

<llo_original>
// kernel: tpu_custom_call.1
$region0: #{tpu_custom_call.1}
  #allocation0 [shape = 'u32[]', space=smem, size = 0x4, offset = 0x4, fixed_abs, tag = 'smem constant byte address 0x4 - core index']
  #allocation1 [shape = 'u32[144,128]{1,0:T(1,128)}', space=vmem, size = 0x12000, scoped, tag = 'internal scratch']
  %s0 = inlined_call_operand.hbm [shape: f32[1,49], index: 0, kind: input, shape index: {}]
  %s1 = inlined_call_operand.hbm [shape: f32[49,1152], index: 1, kind: input, shape index: {}]
  %s2 = inlined_call_operand.hbm [shape: f32[1,1152], index: 2, kind: output, shape index: {}]
  %s3 = sld [smem:[#allocation0]]
  $region26: #{tpu_custom_call.1} parent=0
    _
  %s5 = ssub.s32 1, %s3
  %s6 = scalar_select 0, %s5, %s3
  $region1: #{tpu_custom_call.1} parent=0
    #allocation2 [shape = 'u8[512]{0}', space=vmem, size = 0x400, scoped, tag = 'input window, operand 0, single buffered']
    #allocation3 [shape = 's32[1]{0}', space=sflag, size = 0x4, scoped, tag = 'scoped memory for tpu_custom_call.1']
    #allocation4 [shape = 's32[1]{0}', space=sflag, size = 0x4, scoped, tag = 'scoped memory for tpu_custom_call.1']
    #allocation5 [shape = 'u8[258048]{0}', space=vmem, size = 0x3f000, scoped, tag = 'input window, operand 1, single buffered']
    #allocation6 [shape = 's32[1]{0}', space=sflag, size = 0x4, scoped, tag = 'scoped memory for tpu_custom_call.1']
    #allocation7 [shape = 'u8[4608]{0}', space=vmem, size = 0x1400, scoped, tag = 'output window, operand 0, single buffered']
    %7 = vsyncpa [#allocation3], 0
    %8 = vsyncpa [#allocation6], 0
    %9 = vsyncpa [#allocation4], 0
    // Predicated region
    $region2: #{tpu_custom_call.1} parent=1 // pred_check
      _
    $region3: #{tpu_custom_call.1} parent=1 // pred_check_branch
      %11 = sbr.rel (0) target = $region5
    $region4: #{tpu_custom_call.1} parent=1 // pred_region
      %s13 = ssub.s32 16, 16
      %14 = vsyncadd [#allocation3], %s13
      %s16 = sshll.u32 [#allocation2], 4
      %s17 = int_to_ptr.vmem [resolvable:$true] %s16
      %19 = dma.hbm_to_vmem [thread:$0]  %s0, 16, %s17, [#allocation3]
    $region5: #{tpu_custom_call.1} parent=1 // pred_fallthru
      _
    // Predicated region
    $region6: #{tpu_custom_call.1} parent=1 // pred_check
      _
    $region7: #{tpu_custom_call.1} parent=1 // pred_check_branch
      %21 = sbr.rel (0) target = $region9
    $region8: #{tpu_custom_call.1} parent=1 // pred_region
      %s23 = ssub.s32 8064, 8064
      %24 = vsyncadd [#allocation6], %s23
      %s25 = sshll.u32 [#allocation5], 4
      %s26 = int_to_ptr.vmem [resolvable:$true] %s25
      %31 = dma.hbm_to_vmem [thread:$0]  %s1, 8064, %s26, [#allocation6], 1152, 1152, 72
    $region9: #{tpu_custom_call.1} parent=1 // pred_fallthru
      _
    // Predicated region
    $region10: #{tpu_custom_call.1} parent=1 // pred_check
      _
    $region11: #{tpu_custom_call.1} parent=1 // pred_check_branch
      %33 = sbr.rel (0) target = $region13
    $region12: #{tpu_custom_call.1} parent=1 // pred_region
      %34 = dma.done [#allocation3], 16
    $region13: #{tpu_custom_call.1} parent=1 // pred_fallthru
      _
    // Predicated region
    $region14: #{tpu_custom_call.1} parent=1 // pred_check
      _
    $region15: #{tpu_custom_call.1} parent=1 // pred_check_branch
      %36 = sbr.rel (0) target = $region17
    $region16: #{tpu_custom_call.1} parent=1 // pred_region
      %37 = dma.done [#allocation6], 8064
    $region17: #{tpu_custom_call.1} parent=1 // pred_fallthru
      _
    %v38 = vld [vmem:[#allocation2] sm:$0x1]
    %v39 = vld [vmem:[#allocation5] sm:$0xff]
    %v40 = vld [vmem:[#allocation5 + $0x8] sm:$0xff]
    %v41 = vld [vmem:[#allocation5 + $0x10] sm:$0xff]
    %v42 = vld [vmem:[#allocation5 + $0x18] sm:$0xff]
    %v43 = vld [vmem:[#allocation5 + $0x20] sm:$0xff]
    %v44 = vld [vmem:[#allocation5 + $0x28] sm:$0xff]
    %v45 = vld [vmem:[#allocation5 + $0x30] sm:$0xff]
    %v46 = vld [vmem:[#allocation5 + $0x38] sm:$0xff]
    %v47 = vld [vmem:[#allocation5 + $0x40] sm:$0xff]
    %v48 = vld [vmem:[#allocation5 + $0x48] sm:$0xff]
    %v49 = vld [vmem:[#allocation5 + $0x50] sm:$0xff]
    %v50 = vld [vmem:[#allocation5 + $0x58] sm:$0xff]
    %v51 = vld [vmem:[#allocation5 + $0x60] sm:$0xff]
    %v52 = vld [vmem:[#allocation5 + $0x68] sm:$0xff]
    %v53 = vld [vmem:[#allocation5 + $0x70] sm:$0xff]
    %v54 = vld [vmem:[#allocation5 + $0x78] sm:$0xff]
    %v55 = vld [vmem:[#allocation5 + $0x80] sm:$0xff]
    %v56 = vld [vmem:[#allocation5 + $0x88] sm:$0xff]
    %v57 = vld [vmem:[#allocation5 + $0x90] sm:$0xff]
    %v58 = vld [vmem:[#allocation5 + $0x98] sm:$0xff]
    %v59 = vld [vmem:[#allocation5 + $0xa0] sm:$0xff]
    %v60 = vld [vmem:[#allocation5 + $0xa8] sm:$0xff]
    %v61 = vld [vmem:[#allocation5 + $0xb0] sm:$0xff]
    %v62 = vld [vmem:[#allocation5 + $0xb8] sm:$0xff]
    %v63 = vld [vmem:[#allocation5 + $0xc0] sm:$0xff]
    %v64 = vld [vmem:[#allocation5 + $0xc8] sm:$0xff]
    %v65 = vld [vmem:[#allocation5 + $0xd0] sm:$0xff]
    %v66 = vld [vmem:[#allocation5 + $0xd8] sm:$0xff]
    %v67 = vld [vmem:[#allocation5 + $0xe0] sm:$0xff]
    %v68 = vld [vmem:[#allocation5 + $0xe8] sm:$0xff]
    %v69 = vld [vmem:[#allocation5 + $0xf0] sm:$0xff]
    %v70 = vld [vmem:[#allocation5 + $0xf8] sm:$0xff]
    %v71 = vld [vmem:[#allocation5 + $0x100] sm:$0xff]
    %v72 = vld [vmem:[#allocation5 + $0x108] sm:$0xff]
    %v73 = vld [vmem:[#allocation5 + $0x110] sm:$0xff]
    %v74 = vld [vmem:[#allocation5 + $0x118] sm:$0xff]
    %v75 = vld [vmem:[#allocation5 + $0x120] sm:$0xff]
    %v76 = vld [vmem:[#allocation5 + $0x128] sm:$0xff]
    %v77 = vld [vmem:[#allocation5 + $0x130] sm:$0xff]
    %v78 = vld [vmem:[#allocation5 + $0x138] sm:$0xff]
    %v79 = vld [vmem:[#allocation5 + $0x140] sm:$0xff]
    %v80 = vld [vmem:[#allocation5 + $0x148] sm:$0xff]
    %v81 = vld [vmem:[#allocation5 + $0x150] sm:$0xff]
    %v82 = vld [vmem:[#allocation5 + $0x158] sm:$0xff]
    %v83 = vld [vmem:[#allocation5 + $0x160] sm:$0xff]
    %v84 = vld [vmem:[#allocation5 + $0x168] sm:$0xff]
    %v85 = vld [vmem:[#allocation5 + $0x170] sm:$0xff]
    %v86 = vld [vmem:[#allocation5 + $0x178] sm:$0xff]
    %v87 = vld [vmem:[#allocation5 + $0x180] sm:$0xff]
    %v88 = vld [vmem:[#allocation5 + $0x188] sm:$0xff]
    %v89 = vld [vmem:[#allocation5 + $0x190] sm:$0xff]
    %v90 = vld [vmem:[#allocation5 + $0x198] sm:$0xff]
    %v91 = vld [vmem:[#allocation5 + $0x1a0] sm:$0xff]
    %v92 = vld [vmem:[#allocation5 + $0x1a8] sm:$0xff]
    %v93 = vld [vmem:[#allocation5 + $0x1b0] sm:$0x1]
    %v94 = vld [vmem:[#allocation5 + $0x1b8] sm:$0x1]
    %v95 = vld [vmem:[#allocation5 + $0x1c0] sm:$0x1]
    %v96 = vld [vmem:[#allocation5 + $0x1c8] sm:$0x1]
    %v97 = vld [vmem:[#allocation5 + $0x1d0] sm:$0x1]
    %v98 = vld [vmem:[#allocation5 + $0x1d8] sm:$0x1]
    %v99 = vld [vmem:[#allocation5 + $0x1e0] sm:$0x1]
    %v100 = vld [vmem:[#allocation5 + $0x1e8] sm:$0x1]
    %v101 = vld [vmem:[#allocation5 + $0x1f0] sm:$0x1]
    %vm102 = vcmask 400384
    %v104 = vsel %vm102, %v38, 0
    %vm106 = vcmask 1040384
    %v108 = vsel %vm106, %v93, 0
    %v111 = vsel %vm106, %v94, 0
    %v114 = vsel %vm106, %v95, 0
    %v117 = vsel %vm106, %v96, 0
    %v120 = vsel %vm106, %v97, 0
    %v123 = vsel %vm106, %v98, 0
    %v126 = vsel %vm106, %v99, 0
    %v129 = vsel %vm106, %v100, 0
    %v132 = vsel %vm106, %v101, 0
    %134 = vmatprep.subr.mxu0 %v40
    %135 = vmatpush1.msra.mxu0 %v39
    %136 = vmatprep.subr.mxu0 %v49
    %137 = vmatpush1.msra.mxu0 %v48
    %138 = vmatprep.subr.mxu0 %v58
    %139 = vmatpush1.msra.mxu0 %v57
    %140 = vmatprep.subr.mxu0 %v67
    %141 = vmatpush1.msra.mxu0 %v66
    %142 = vmatprep.subr.mxu0 %v76
    %143 = vmatpush1.msra.mxu0 %v75
    %144 = vmatprep.subr.mxu0 %v85
    %145 = vmatpush1.msra.mxu0 %v84
    %146 = vmatprep.subr.mxu0 %v111
    %147 = vmatpush1.msra.mxu0 %v108
    %148 = vmatprep.subr.mxu0 0.0
    %149 = vmatpush1.msra.mxu0 0.0
    %150 = vmatprep.subr.mxu0 0.0
    %151 = vmatpush1.msra.mxu0 0.0
    %152 = vmatprep.subr.mxu0 0.0
    %153 = vmatpush1.msra.mxu0 0.0
    %154 = vmatprep.subr.mxu0 0.0
    %155 = vmatpush1.msra.mxu0 0.0
    %156 = vmatprep.subr.mxu0 0.0
    %157 = vmatpush1.msra.mxu0 0.0
    %158 = vmatprep.subr.mxu0 0.0
    %159 = vmatpush1.msra.mxu0 0.0
    %160 = vmatprep.subr.mxu0 0.0
    %161 = vmatpush1.msra.mxu0 0.0
    %162 = vmatprep.subr.mxu0 0.0
    %163 = vmatpush1.msra.mxu0 0.0
    %164 = vmatprep.subr.mxu0 0.0
    %165 = vmatpush1.msra.mxu0 0.0
    %166 = vmatprep.subr.mxu0 0.0
    %167 = vmatpush1.msra.mxu0 0.0
    %168 = vmatprep.subr.mxu0 0.0
    %169 = vmatpush1.msra.mxu0 0.0
    %170 = vmatprep.subr.mxu0 0.0
    %171 = vmatpush1.msra.mxu0 0.0
    %172 = vmatprep.subr.mxu0 0.0
    %173 = vmatpush1.msra.mxu0 0.0
    %174 = vmatprep.subr.mxu0 0.0
    %175 = vmatpush1.msra.mxu0 0.0
    %176 = vmatprep.subr.mxu0 0.0
    %177 = vmatpush1.msra.mxu0 0.0
    %178 = vmatprep.subr.mxu0 0.0
    %179 = vmatpush1.msra.mxu0 0.0
    %180 = vmatprep.subr.mxu0 0.0
    %181 = vmatpush1.msra.mxu0 0.0
    %182 = vmatprep.subr.mxu0 0.0
    %183 = vmatpush1.msra.mxu0 0.0
    %184 = vmatprep.subr.mxu0 0.0
    %185 = vmatpush1.msra.mxu0 0.0
    %186 = vmatprep.subr.mxu0 0.0
    %187 = vmatpush1.msra.mxu0 0.0
    %188 = vmatprep.subr.mxu0 0.0
    %189 = vmatpush1.msra.mxu0 0.0
    %190 = vmatprep.subr.mxu0 0.0
    %191 = vmatpush1.msra.mxu0 0.0
    %192 = vmatprep.subr.mxu0 0.0
    %193 = vmatpush1.msra.mxu0 0.0
    %194 = vmatprep.subr.mxu0 0.0
    %195 = vmatpush1.msra.mxu0 0.0
    %196 = vmatprep.subr.mxu0 0.0
    %197 = vmatpush1.msra.mxu0 0.0
    %198 = vmatprep.mubr.f32.mxu0 0.0
    %199 = vmatmul.mubr.f32.gmra.mrb[0].mxu0 %v104
    %v200 = vpop.f32.mrb[0].mxu0
    %v201 = vadd.f32 0.0, %v200
    %v202 = vpop.f32.mrb[0].mxu0
    %v203 = vadd.f32 0.0, %v202
    %204 = vdwg.mxu0
    %205 = vmatprep.subr.mxu0 %v42
    %206 = vmatpush1.msra.mxu0 %v41
    %207 = vmatprep.subr.mxu0 %v51
    %208 = vmatpush1.msra.mxu0 %v50
    %209 = vmatprep.subr.mxu0 %v60
    %210 = vmatpush1.msra.mxu0 %v59
    %211 = vmatprep.subr.mxu0 %v69
    %212 = vmatpush1.msra.mxu0 %v68
    %213 = vmatprep.subr.mxu0 %v78
    %214 = vmatpush1.msra.mxu0 %v77
    %215 = vmatprep.subr.mxu0 %v87
    %216 = vmatpush1.msra.mxu0 %v86
    %217 = vmatprep.subr.mxu0 %v117
    %218 = vmatpush1.msra.mxu0 %v114
    %219 = vmatprep.subr.mxu0 0.0
    %220 = vmatpush1.msra.mxu0 0.0
    %221 = vmatprep.subr.mxu0 0.0
    %222 = vmatpush1.msra.mxu0 0.0
    %223 = vmatprep.subr.mxu0 0.0
    %224 = vmatpush1.msra.mxu0 0.0
    %225 = vmatprep.subr.mxu0 0.0
    %226 = vmatpush1.msra.mxu0 0.0
    %227 = vmatprep.subr.mxu0 0.0
    %228 = vmatpush1.msra.mxu0 0.0
    %229 = vmatprep.subr.mxu0 0.0
    %230 = vmatpush1.msra.mxu0 0.0
    %231 = vmatprep.subr.mxu0 0.0
    %232 = vmatpush1.msra.mxu0 0.0
    %233 = vmatprep.subr.mxu0 0.0
    %234 = vmatpush1.msra.mxu0 0.0
    %235 = vmatprep.subr.mxu0 0.0
    %236 = vmatpush1.msra.mxu0 0.0
    %237 = vmatprep.subr.mxu0 0.0
    %238 = vmatpush1.msra.mxu0 0.0
    %239 = vmatprep.subr.mxu0 0.0
    %240 = vmatpush1.msra.mxu0 0.0
    %241 = vmatprep.subr.mxu0 0.0
    %242 = vmatpush1.msra.mxu0 0.0
    %243 = vmatprep.subr.mxu0 0.0
    %244 = vmatpush1.msra.mxu0 0.0
    %245 = vmatprep.subr.mxu0 0.0
    %246 = vmatpush1.msra.mxu0 0.0
    %247 = vmatprep.subr.mxu0 0.0
    %248 = vmatpush1.msra.mxu0 0.0
    %249 = vmatprep.subr.mxu0 0.0
    %250 = vmatpush1.msra.mxu0 0.0
    %251 = vmatprep.subr.mxu0 0.0
    %252 = vmatpush1.msra.mxu0 0.0
    %253 = vmatprep.subr.mxu0 0.0
    %254 = vmatpush1.msra.mxu0 0.0
    %255 = vmatprep.subr.mxu0 0.0
    %256 = vmatpush1.msra.mxu0 0.0
    %257 = vmatprep.subr.mxu0 0.0
    %258 = vmatpush1.msra.mxu0 0.0
    %259 = vmatprep.subr.mxu0 0.0
    %260 = vmatpush1.msra.mxu0 0.0
    %261 = vmatprep.subr.mxu0 0.0
    %262 = vmatpush1.msra.mxu0 0.0
    %263 = vmatprep.subr.mxu0 0.0
    %264 = vmatpush1.msra.mxu0 0.0
    %265 = vmatprep.subr.mxu0 0.0
    %266 = vmatpush1.msra.mxu0 0.0
    %267 = vmatprep.subr.mxu0 0.0
    %268 = vmatpush1.msra.mxu0 0.0
    %269 = vmatprep.mubr.f32.mxu0 0.0
    %270 = vmatmul.mubr.f32.gmra.mrb[0].mxu0 %v104
    %v271 = vpop.f32.mrb[0].mxu0
    %v272 = vadd.f32 0.0, %v271
    %v273 = vpop.f32.mrb[0].mxu0
    %v274 = vadd.f32 0.0, %v273
    %275 = vdwg.mxu0
    %276 = vmatprep.subr.mxu0 %v44
    %277 = vmatpush1.msra.mxu0 %v43
    %278 = vmatprep.subr.mxu0 %v53
    %279 = vmatpush1.msra.mxu0 %v52
    %280 = vmatprep.subr.mxu0 %v62
    %281 = vmatpush1.msra.mxu0 %v61
    %282 = vmatprep.subr.mxu0 %v71
    %283 = vmatpush1.msra.mxu0 %v70
    %284 = vmatprep.subr.mxu0 %v80
    %285 = vmatpush1.msra.mxu0 %v79
    %286 = vmatprep.subr.mxu0 %v89
    %287 = vmatpush1.msra.mxu0 %v88
    %288 = vmatprep.subr.mxu0 %v123
    %289 = vmatpush1.msra.mxu0 %v120
    %290 = vmatprep.subr.mxu0 0.0
    %291 = vmatpush1.msra.mxu0 0.0
    %292 = vmatprep.subr.mxu0 0.0
    %293 = vmatpush1.msra.mxu0 0.0
    %294 = vmatprep.subr.mxu0 0.0
    %295 = vmatpush1.msra.mxu0 0.0
    %296 = vmatprep.subr.mxu0 0.0
    %297 = vmatpush1.msra.mxu0 0.0
    %298 = vmatprep.subr.mxu0 0.0
    %299 = vmatpush1.msra.mxu0 0.0
    %300 = vmatprep.subr.mxu0 0.0
    %301 = vmatpush1.msra.mxu0 0.0
    %302 = vmatprep.subr.mxu0 0.0
    %303 = vmatpush1.msra.mxu0 0.0
    %304 = vmatprep.subr.mxu0 0.0
    %305 = vmatpush1.msra.mxu0 0.0
    %306 = vmatprep.subr.mxu0 0.0
    %307 = vmatpush1.msra.mxu0 0.0
    %308 = vmatprep.subr.mxu0 0.0
    %309 = vmatpush1.msra.mxu0 0.0
    %310 = vmatprep.subr.mxu0 0.0
    %311 = vmatpush1.msra.mxu0 0.0
    %312 = vmatprep.subr.mxu0 0.0
    %313 = vmatpush1.msra.mxu0 0.0
    %314 = vmatprep.subr.mxu0 0.0
    %315 = vmatpush1.msra.mxu0 0.0
    %316 = vmatprep.subr.mxu0 0.0
    %317 = vmatpush1.msra.mxu0 0.0
    %318 = vmatprep.subr.mxu0 0.0
    %319 = vmatpush1.msra.mxu0 0.0
    %320 = vmatprep.subr.mxu0 0.0
    %321 = vmatpush1.msra.mxu0 0.0
    %322 = vmatprep.subr.mxu0 0.0
    %323 = vmatpush1.msra.mxu0 0.0
    %324 = vmatprep.subr.mxu0 0.0
    %325 = vmatpush1.msra.mxu0 0.0
    %326 = vmatprep.subr.mxu0 0.0
    %327 = vmatpush1.msra.mxu0 0.0
    %328 = vmatprep.subr.mxu0 0.0
    %329 = vmatpush1.msra.mxu0 0.0
    %330 = vmatprep.subr.mxu0 0.0
    %331 = vmatpush1.msra.mxu0 0.0
    %332 = vmatprep.subr.mxu0 0.0
    %333 = vmatpush1.msra.mxu0 0.0
    %334 = vmatprep.subr.mxu0 0.0
    %335 = vmatpush1.msra.mxu0 0.0
    %336 = vmatprep.subr.mxu0 0.0
    %337 = vmatpush1.msra.mxu0 0.0
    %338 = vmatprep.subr.mxu0 0.0
    %339 = vmatpush1.msra.mxu0 0.0
    %340 = vmatprep.mubr.f32.mxu0 0.0
    %341 = vmatmul.mubr.f32.gmra.mrb[0].mxu0 %v104
    %v342 = vpop.f32.mrb[0].mxu0
    %v343 = vadd.f32 0.0, %v342
    %v344 = vpop.f32.mrb[0].mxu0
    %v345 = vadd.f32 0.0, %v344
    %346 = vdwg.mxu0
    %347 = vmatprep.subr.mxu0 %v46
    %348 = vmatpush1.msra.mxu0 %v45
    %349 = vmatprep.subr.mxu0 %v55
    %350 = vmatpush1.msra.mxu0 %v54
    %351 = vmatprep.subr.mxu0 %v64
    %352 = vmatpush1.msra.mxu0 %v63
    %353 = vmatprep.subr.mxu0 %v73
    %354 = vmatpush1.msra.mxu0 %v72
    %355 = vmatprep.subr.mxu0 %v82
    %356 = vmatpush1.msra.mxu0 %v81
    %357 = vmatprep.subr.mxu0 %v91
    %358 = vmatpush1.msra.mxu0 %v90
    %359 = vmatprep.subr.mxu0 %v129
    %360 = vmatpush1.msra.mxu0 %v126
    %361 = vmatprep.subr.mxu0 0.0
    %362 = vmatpush1.msra.mxu0 0.0
    %363 = vmatprep.subr.mxu0 0.0
    %364 = vmatpush1.msra.mxu0 0.0
    %365 = vmatprep.subr.mxu0 0.0
    %366 = vmatpush1.msra.mxu0 0.0
    %367 = vmatprep.subr.mxu0 0.0
    %368 = vmatpush1.msra.mxu0 0.0
    %369 = vmatprep.subr.mxu0 0.0
    %370 = vmatpush1.msra.mxu0 0.0
    %371 = vmatprep.subr.mxu0 0.0
    %372 = vmatpush1.msra.mxu0 0.0
    %373 = vmatprep.subr.mxu0 0.0
    %374 = vmatpush1.msra.mxu0 0.0
    %375 = vmatprep.subr.mxu0 0.0
    %376 = vmatpush1.msra.mxu0 0.0
    %377 = vmatprep.subr.mxu0 0.0
    %378 = vmatpush1.msra.mxu0 0.0
    %379 = vmatprep.subr.mxu0 0.0
    %380 = vmatpush1.msra.mxu0 0.0
    %381 = vmatprep.subr.mxu0 0.0
    %382 = vmatpush1.msra.mxu0 0.0
    %383 = vmatprep.subr.mxu0 0.0
    %384 = vmatpush1.msra.mxu0 0.0
    %385 = vmatprep.subr.mxu0 0.0
    %386 = vmatpush1.msra.mxu0 0.0
    %387 = vmatprep.subr.mxu0 0.0
    %388 = vmatpush1.msra.mxu0 0.0
    %389 = vmatprep.subr.mxu0 0.0
    %390 = vmatpush1.msra.mxu0 0.0
    %391 = vmatprep.subr.mxu0 0.0
    %392 = vmatpush1.msra.mxu0 0.0
    %393 = vmatprep.subr.mxu0 0.0
    %394 = vmatpush1.msra.mxu0 0.0
    %395 = vmatprep.subr.mxu0 0.0
    %396 = vmatpush1.msra.mxu0 0.0
    %397 = vmatprep.subr.mxu0 0.0
    %398 = vmatpush1.msra.mxu0 0.0
    %399 = vmatprep.subr.mxu0 0.0
    %400 = vmatpush1.msra.mxu0 0.0
    %401 = vmatprep.subr.mxu0 0.0
    %402 = vmatpush1.msra.mxu0 0.0
    %403 = vmatprep.subr.mxu0 0.0
    %404 = vmatpush1.msra.mxu0 0.0
    %405 = vmatprep.subr.mxu0 0.0
    %406 = vmatpush1.msra.mxu0 0.0
    %407 = vmatprep.subr.mxu0 0.0
    %408 = vmatpush1.msra.mxu0 0.0
    %409 = vmatprep.subr.mxu0 0.0
    %410 = vmatpush1.msra.mxu0 0.0
    %411 = vmatprep.mubr.f32.mxu0 0.0
    %412 = vmatmul.mubr.f32.gmra.mrb[0].mxu0 %v104
    %v413 = vpop.f32.mrb[0].mxu0
    %v414 = vadd.f32 0.0, %v413
    %v415 = vpop.f32.mrb[0].mxu0
    %v416 = vadd.f32 0.0, %v415
    %417 = vdwg.mxu0
    %418 = vmatprep.subr.mxu0 0.0
    %419 = vmatpush1.msra.mxu0 %v47
    %420 = vmatprep.subr.mxu0 0.0
    %421 = vmatpush1.msra.mxu0 %v56
    %422 = vmatprep.subr.mxu0 0.0
    %423 = vmatpush1.msra.mxu0 %v65
    %424 = vmatprep.subr.mxu0 0.0
    %425 = vmatpush1.msra.mxu0 %v74
    %426 = vmatprep.subr.mxu0 0.0
    %427 = vmatpush1.msra.mxu0 %v83
    %428 = vmatprep.subr.mxu0 0.0
    %429 = vmatpush1.msra.mxu0 %v92
    %430 = vmatprep.subr.mxu0 0.0
    %431 = vmatpush1.msra.mxu0 %v132
    %432 = vmatprep.subr.mxu0 0.0
    %433 = vmatpush1.msra.mxu0 0.0
    %434 = vmatprep.subr.mxu0 0.0
    %435 = vmatpush1.msra.mxu0 0.0
    %436 = vmatprep.subr.mxu0 0.0
    %437 = vmatpush1.msra.mxu0 0.0
    %438 = vmatprep.subr.mxu0 0.0
    %439 = vmatpush1.msra.mxu0 0.0
    %440 = vmatprep.subr.mxu0 0.0
    %441 = vmatpush1.msra.mxu0 0.0
    %442 = vmatprep.subr.mxu0 0.0
    %443 = vmatpush1.msra.mxu0 0.0
    %444 = vmatprep.subr.mxu0 0.0
    %445 = vmatpush1.msra.mxu0 0.0
    %446 = vmatprep.subr.mxu0 0.0
    %447 = vmatpush1.msra.mxu0 0.0
    %448 = vmatprep.subr.mxu0 0.0
    %449 = vmatpush1.msra.mxu0 0.0
    %450 = vmatprep.subr.mxu0 0.0
    %451 = vmatpush1.msra.mxu0 0.0
    %452 = vmatprep.subr.mxu0 0.0
    %453 = vmatpush1.msra.mxu0 0.0
    %454 = vmatprep.subr.mxu0 0.0
    %455 = vmatpush1.msra.mxu0 0.0
    %456 = vmatprep.subr.mxu0 0.0
    %457 = vmatpush1.msra.mxu0 0.0
    %458 = vmatprep.subr.mxu0 0.0
    %459 = vmatpush1.msra.mxu0 0.0
    %460 = vmatprep.subr.mxu0 0.0
    %461 = vmatpush1.msra.mxu0 0.0
    %462 = vmatprep.subr.mxu0 0.0
    %463 = vmatpush1.msra.mxu0 0.0
    %464 = vmatprep.subr.mxu0 0.0
    %465 = vmatpush1.msra.mxu0 0.0
    %466 = vmatprep.subr.mxu0 0.0
    %467 = vmatpush1.msra.mxu0 0.0
    %468 = vmatprep.subr.mxu0 0.0
    %469 = vmatpush1.msra.mxu0 0.0
    %470 = vmatprep.subr.mxu0 0.0
    %471 = vmatpush1.msra.mxu0 0.0
    %472 = vmatprep.subr.mxu0 0.0
    %473 = vmatpush1.msra.mxu0 0.0
    %474 = vmatprep.subr.mxu0 0.0
    %475 = vmatpush1.msra.mxu0 0.0
    %476 = vmatprep.subr.mxu0 0.0
    %477 = vmatpush1.msra.mxu0 0.0
    %478 = vmatprep.subr.mxu0 0.0
    %479 = vmatpush1.msra.mxu0 0.0
    %480 = vmatprep.subr.mxu0 0.0
    %481 = vmatpush1.msra.mxu0 0.0
    %482 = vmatprep.mubr.f32.mxu0 0.0
    %483 = vmatmul.mubr.f32.gmra.mrb[0].mxu0 %v104
    %v484 = vpop.f32.mrb[0].mxu0
    %v485 = vadd.f32 0.0, %v484
    %v486 = vpop.f32.mrb[0].mxu0
    %487 = vdwg.mxu0
    %v488 = vmul.f32 %v201, 0.5
    %v489 = vmul.f32 %v203, 0.5
    %v490 = vmul.f32 %v272, 0.5
    %v491 = vmul.f32 %v274, 0.5
    %v492 = vmul.f32 %v343, 0.5
    %v493 = vmul.f32 %v345, 0.5
    %v494 = vmul.f32 %v414, 0.5
    %v495 = vmul.f32 %v416, 0.5
    %v496 = vmul.f32 %v485, 0.5
    %v497 = vtanh.pop %v488
    %v498 = vtanh.pop %v489
    %v499 = vtanh.pop %v490
    %v500 = vtanh.pop %v491
    %v501 = vtanh.pop %v492
    %v502 = vtanh.pop %v493
    %v503 = vtanh.pop %v494
    %v504 = vtanh.pop %v495
    %v505 = vtanh.pop %v496
    %v506 = vmul.f32 %v497, 0.5
    %v507 = vmul.f32 %v498, 0.5
    %v508 = vmul.f32 %v499, 0.5
    %v509 = vmul.f32 %v500, 0.5
    %v510 = vmul.f32 %v501, 0.5
    %v511 = vmul.f32 %v502, 0.5
    %v512 = vmul.f32 %v503, 0.5
    %v513 = vmul.f32 %v504, 0.5
    %v514 = vmul.f32 %v505, 0.5
    %v515 = vadd.f32 %v506, 0.5
    %v516 = vadd.f32 %v507, 0.5
    %v517 = vadd.f32 %v508, 0.5
    %v518 = vadd.f32 %v509, 0.5
    %v519 = vadd.f32 %v510, 0.5
    %v520 = vadd.f32 %v511, 0.5
    %v521 = vadd.f32 %v512, 0.5
    %v522 = vadd.f32 %v513, 0.5
    %v523 = vadd.f32 %v514, 0.5
    %v533 = vcombine.low %v515, %v516
    %v534 = vcombine.low %v517, %v518
    %v535 = vcombine.low %v519, %v520
    %v536 = vcombine.low %v521, %v522
    %v538 = vunpack.c.l.s4 1966171168
    %v539 = vunpack.c.0.s8 %v538
    %v540 = vlaneseq
    %v541 = vshrl.u32 %v540, 7
    %v542 = vsub.s32 %v539, %v541
    %v543 = vrot.slane %v533, %v542
    %v545 = vunpack.c.l.s4 1966171168
    %v546 = vunpack.c.0.s8 %v545
    %v547 = vlaneseq
    %v548 = vshrl.u32 %v547, 7
    %v549 = vsub.s32 %v546, %v548
    %v550 = vrot.slane %v534, %v549
    %v552 = vunpack.c.l.s4 1966171168
    %v553 = vunpack.c.0.s8 %v552
    %v554 = vlaneseq
    %v555 = vshrl.u32 %v554, 7
    %v556 = vsub.s32 %v553, %v555
    %v557 = vrot.slane %v535, %v556
    %v559 = vunpack.c.l.s4 1966171168
    %v560 = vunpack.c.0.s8 %v559
    %v561 = vlaneseq
    %v562 = vshrl.u32 %v561, 7
    %v563 = vsub.s32 %v560, %v562
    %v564 = vrot.slane %v536, %v563
    %v565 = vcombine.low %v543, %v550
    %v566 = vcombine.low %v557, %v564
    %v568 = vunpack.c.l.s4 1966171168
    %v569 = vunpack.c.0.s8 %v568
    %v570 = vlaneseq
    %v571 = vshrl.u32 %v570, 7
    %v572 = vsub.s32 %v569, %v571
    %v573 = vrot.slane %v565, %v572
    %v575 = vunpack.c.l.s4 1966171168
    %v576 = vunpack.c.0.s8 %v575
    %v577 = vlaneseq
    %v578 = vshrl.u32 %v577, 7
    %v579 = vsub.s32 %v576, %v578
    %v580 = vrot.slane %v566, %v579
    %v581 = vcombine.low %v573, %v580
    %v583 = vunpack.c.l.s4 1966171168
    %v584 = vunpack.c.0.s8 %v583
    %v585 = vlaneseq
    %v586 = vshrl.u32 %v585, 7
    %v587 = vsub.s32 %v584, %v586
    %v588 = vrot.slane %v523, %v587
    %v590 = vunpack.c.l.s4 1966171168
    %v591 = vunpack.c.0.s8 %v590
    %v592 = vlaneseq
    %v593 = vshrl.u32 %v592, 7
    %v594 = vsub.s32 %v591, %v593
    %v595 = vrot.slane %v588, %v594
    %598 = vst [vmem:[#allocation7] sm:$0xff] %v581
    %v599 = vlaneseq
    %vm600 = vcmp.ge.s32.totalorder %v599, 0
    %vm601 = vcmp.lt.s32.totalorder %v599, 128
    %vm602 = vmand %vm600, %vm601
    %603 = vst.msk [vmem:[#allocation7 + $0x8] sm:$0x1] %vm602, %v595
    // Predicated region
    $region18: #{tpu_custom_call.1} parent=1 // pred_check
      _
    $region19: #{tpu_custom_call.1} parent=1 // pred_check_branch
      %605 = sbr.rel (0) target = $region21
    $region20: #{tpu_custom_call.1} parent=1 // pred_region
      %s607 = ssub.s32 144, 144
      %608 = vsyncadd [#allocation4], %s607
      %s610 = sshll.u32 [#allocation7], 4
      %s611 = int_to_ptr.vmem [resolvable:$true] %s610
      %613 = dma.vmem_to_hbm [thread:$0]  %s611, 144, %s2, [#allocation4]
    $region21: #{tpu_custom_call.1} parent=1 // pred_fallthru
      _
    // Predicated region
    $region22: #{tpu_custom_call.1} parent=1 // pred_check
      _
    $region23: #{tpu_custom_call.1} parent=1 // pred_check_branch
      %615 = sbr.rel (0) target = $region25
    $region24: #{tpu_custom_call.1} parent=1 // pred_region
      %616 = dma.done [#allocation4], 144
    $region25: #{tpu_custom_call.1} parent=1 // pred_fallthru
      _
    %617 = vsyncpa [#allocation3], 1
    %618 = vsyncpa [#allocation6], 1
    %619 = vsyncpa [#allocation4], 1

</llo_original>
